<compile_context>
chip_gen: v6e
topology: v6e:2x2x1
jax: 0.10.0
libtpu: 0.0.40
codegen_flags: <defaults>
</compile_context>

<pallas_src>
import functools

import jax
import jax.numpy as jnp
from jax.experimental import pallas as pl
from jax.experimental.pallas import tpu as pltpu


def _round_up(x, m):
    return ((x + m - 1) // m) * m


def finetune_kernel(x_ref, wb_ref, bb_ref, wl_ref, bl_ref, out_ref, *, reduce_axis):
    """
    x_ref:   (TN, C, HW) or (TN, HW, C) f32 raw input tile (GAP fused here; 1/HW folded into wb)
    wb_ref:  (C, Dp)  bf16  pre-masked, pre-scaled backbone weight
    bb_ref:  (1, Dp)  f32   backbone bias (zero-padded)
    wl_ref:  (Dp, WP) bf16  classifier weight (zero-padded)
    bl_ref:  (1, WP)  f32   classifier bias (zero-padded)
    out_ref: (TN, WP) f32   lane-dense padded logits
    """
    # Fused global average pool: plain sum (the 1/HW scale is folded into wb in the wrapper).
    x = jnp.sum(x_ref[...], axis=reduce_axis)                       # (TN, C) f32

    # Synthetic backbone body: pruning-masked linear + ReLU (bf16 MXU inputs, f32 accumulate).
    feat = jnp.dot(
        x.astype(jnp.bfloat16), wb_ref[...],
        preferred_element_type=jnp.float32,
    ) + bb_ref[...]
    feat = jnp.maximum(feat, 0.0)                                   # (TN, Dp) f32

    # F.normalize(x, p=2, dim=1, eps=1e-12) == x / max(||x||, eps), implemented as
    # x * rsqrt(max(||x||^2, eps^2)) so the reciprocal-sqrt goes to the EUP slot.
    sq = jnp.sum(feat * feat, axis=1, keepdims=True)
    feat = feat * jax.lax.rsqrt(jnp.maximum(sq, 1e-24))

    # Classifier head self.L(x): feat @ W_L^T + b_L, stored to a lane-dense 128-wide slab.
    out_ref[...] = jnp.dot(
        feat.astype(jnp.bfloat16), wl_ref[...],
        preferred_element_type=jnp.float32,
    ) + bl_ref[...]


def _vmem_capacity_bytes():
    try:
        return int(pltpu.get_tpu_info().vmem_capacity_bytes)
    except Exception:
        return 64 * 1024 * 1024  # v7x-safe fallback


def finetune_forward(x_nchw, wb, mask, bb, wl, bl):
    """Glue: pre-fuse mask/scale/bf16 into weights, pick layout + tile size, one fused pallas_call."""
    n, c, h, w = x_nchw.shape
    hw = h * w
    d = wb.shape[1]
    way = wl.shape[1]

    # Lane-dense padding for both matmul N/K dims: D -> Dp, way -> WP (multiples of 128).
    dp = _round_up(d, 128)
    wp = _round_up(way, 128)

    # Pre-fuse: pruning mask * weight, folded 1/HW GAP scale, zero-pad, cast to bf16 once.
    wb_fused = jnp.zeros((c, dp), jnp.float32).at[:, :d].set(wb * mask * (1.0 / hw))
    wb_bf16 = wb_fused.astype(jnp.bfloat16)
    bb_p = jnp.zeros((1, dp), jnp.float32).at[:, :d].set(bb.reshape(1, d))
    wl_p = jnp.zeros((dp, wp), jnp.float32).at[:d, :way].set(wl)
    wl_bf16 = wl_p.astype(jnp.bfloat16)
    bl_p = jnp.zeros((1, wp), jnp.float32).at[:, :way].set(bl.reshape(1, way))

    # Input layout: put the larger of (C, HW) on the lane axis so the dominant input DMA is
    # lane-dense (real backbones: HW=49 << C, so ship (N, HW, C); toy shapes keep (N, C, HW)).
    if c >= hw:
        x3 = jnp.transpose(x_nchw.reshape(n, c, hw), (0, 2, 1))    # (n, hw, c), reduce sublane
        reduce_axis = 1
    else:
        x3 = x_nchw.reshape(n, c, hw)                              # (n, c, hw), reduce lane
        reduce_axis = 2

    # --- derive TN and vmem_limit_bytes from explicit tile math --------------------------------
    vmem_cap = _vmem_capacity_bytes()
    # Resident weights/biases (assume double-buffered to be safe) in bf16/f32.
    weight_bytes = 2 * (c * dp * 2 + dp * wp * 2 + dp * 4 + wp * 4)
    # Per batch-row bytes: f32 input tile + f32 output tile, each double-buffered.
    per_row = 2 * c * hw * 4 + 2 * wp * 4
    budget = vmem_cap - weight_bytes - (8 << 20)                   # headroom for compiler scratch
    tn_budget = max(8, (budget // per_row) // 8 * 8) if budget > per_row * 8 else 8

    n_sub = _round_up(n, 8)
    tn = int(min(256, tn_budget, n_sub))
    tn = max(8, (tn // 8) * 8)
    # v7x: ensure >= 2 grid steps when the batch allows it, so both TensorCores get work.
    if n_sub >= 16 and pl.cdiv(n_sub, tn) < 2:
        tn = max(8, _round_up(pl.cdiv(n_sub, 2), 8))

    n_pad = (-n) % tn
    if n_pad:
        x3 = jnp.pad(x3, ((0, n_pad), (0, 0), (0, 0)))
    n_tot = n + n_pad
    grid = (n_tot // tn,)

    need = weight_bytes + 2 * tn * c * hw * 4 + 2 * tn * wp * 4 + (4 << 20)
    vmem_limit = int(min(max(need, 16 << 20), vmem_cap))
    # --------------------------------------------------------------------------------------------

    cost = pl.CostEstimate(
        flops=2 * n_tot * c * dp + 2 * n_tot * dp * wp + n_tot * c * hw + 4 * n_tot * dp,
        transcendentals=n_tot,  # one rsqrt per row
        bytes_accessed=x3.size * 4 + wb_bf16.size * 2 + wl_bf16.size * 2
        + bb_p.size * 4 + bl_p.size * 4 + n_tot * wp * 4,
    )

    kernel = functools.partial(finetune_kernel, reduce_axis=reduce_axis)
    x_block = (tn,) + x3.shape[1:]

    out_p = pl.pallas_call(
        kernel,
        out_shape=jax.ShapeDtypeStruct((n_tot, wp), jnp.float32),
        grid=grid,
        in_specs=[
            pl.BlockSpec(x_block, lambda i: (i, 0, 0)),            # input tile per batch block
            pl.BlockSpec((c, dp), lambda i: (0, 0)),               # bf16 fused weight, VMEM-resident
            pl.BlockSpec((1, dp), lambda i: (0, 0)),
            pl.BlockSpec((dp, wp), lambda i: (0, 0)),              # bf16 classifier weight
            pl.BlockSpec((1, wp), lambda i: (0, 0)),
        ],
        out_specs=pl.BlockSpec((tn, wp), lambda i: (i, 0)),
        compiler_params=pltpu.CompilerParams(
            dimension_semantics=("parallel",),                     # shard batch tiles over TCs (v7x)
            vmem_limit_bytes=vmem_limit,
        ),
        cost_estimate=cost,
    )(x3, wb_bf16, bb_p, wl_bf16, bl_p)

    return out_p[:n, :way]


def reference_forward(x_nchw, wb, mask, bb, wl, bl):
    """Pure-JAX f32 reference mirroring the PyTorch forward."""
    x = jnp.mean(x_nchw, axis=(2, 3))
    feat = jnp.maximum(x @ (wb * mask) + bb, 0.0)
    norm = jnp.sqrt(jnp.sum(feat * feat, axis=1, keepdims=True))
    feat = feat / jnp.maximum(norm, 1e-12)
    return feat @ wl + bl


if __name__ == "__main__":
    # Small, deterministic shapes: batch=8, channels=4, spatial=16, outdim=32, way=5
    N, C, H, W = 8, 4, 16, 16
    OUTDIM, WAY = 32, 5

    key = jax.random.PRNGKey(0)
    k_x, k_wb, k_bb, k_wl, k_bl, k_mask = jax.random.split(key, 6)

    x = jax.random.normal(k_x, (N, C, H, W), dtype=jnp.float32)

    # synthetic backbone params (deterministic init)
    wb = jax.random.normal(k_wb, (C, OUTDIM), dtype=jnp.float32) * 0.1
    bb = jax.random.normal(k_bb, (OUTDIM,), dtype=jnp.float32) * 0.01
    mask = jax.random.bernoulli(k_mask, p=0.7, shape=(C, OUTDIM)).astype(jnp.float32)

    # classifier head: nn.Linear(outdim, way) -> PyTorch weight (way, outdim); transpose once.
    wl_torch = jax.random.normal(k_wl, (WAY, OUTDIM), dtype=jnp.float32) * 0.1
    wl = wl_torch.T  # (OUTDIM, WAY)
    bl = jax.random.normal(k_bl, (WAY,), dtype=jnp.float32) * 0.01

    out = finetune_forward(x, wb, mask, bb, wl, bl)
    out = jax.block_until_ready(out)

    ref = reference_forward(x, wb, mask, bb, wl, bl)
    assert out.shape == (N, WAY)
    # bf16 MXU inputs (f32 accumulate / f32 normalize) loosen the tolerance vs the f32 reference.
    assert jnp.allclose(out, ref, atol=2e-2, rtol=2e-2), "mismatch vs reference"

    # TODO(synk): the real pre-trained backbone (arbitrary nn.Module) is replaced by a synthetic
    # GAP + pruning-masked-linear + ReLU feature extractor; only its interface (features +
    # apply_pruning_mask) is reproduced here.
    print("KERNEL_OK")
</pallas_src>

<mosaic_0001>
module attributes {stable_mosaic.version = 11 : i64} {
  func.func @finetune_kernel(%arg0: i32, %arg1: memref<8x4x256xf32, #tpu.memory_space<vmem>>, %arg2: memref<4x128xbf16, #tpu.memory_space<vmem>>, %arg3: memref<1x128xf32, #tpu.memory_space<vmem>>, %arg4: memref<128x128xbf16, #tpu.memory_space<vmem>>, %arg5: memref<1x128xf32, #tpu.memory_space<vmem>>, %arg6: memref<8x128xf32, #tpu.memory_space<vmem>>) attributes {dimension_semantics = [#tpu.dimension_semantics<parallel>], iteration_bounds = array<i64: 1>, scalar_prefetch = 0 : i64, scratch_operands = 0 : i64, tpu.core_type = #tpu.core_type<tc>, window_params = [{transform_indices = @transform_0, window_bounds = array<i64: 8, 4, 256>}, {pipeline_mode = #tpu.pipeline_mode<synchronous>, transform_indices = @transform_1, window_bounds = array<i64: 4, 128>}, {pipeline_mode = #tpu.pipeline_mode<synchronous>, transform_indices = @transform_2, window_bounds = array<i64: 1, 128>}, {pipeline_mode = #tpu.pipeline_mode<synchronous>, transform_indices = @transform_3, window_bounds = array<i64: 128, 128>}, {pipeline_mode = #tpu.pipeline_mode<synchronous>, transform_indices = @transform_4, window_bounds = array<i64: 1, 128>}, {transform_indices = @transform_5, window_bounds = array<i64: 8, 128>}]} {
    %c0 = arith.constant 0 : index
    %c0_0 = arith.constant 0 : index
    %c0_1 = arith.constant 0 : index
    %0 = vector.load %arg1[%c0, %c0_0, %c0_1] : memref<8x4x256xf32, #tpu.memory_space<vmem>>, vector<8x4x256xf32>
    %cst = arith.constant dense<0.000000e+00> : vector<8x4xf32>
    %1 = vector.multi_reduction <add>, %0, %cst [2] : vector<8x4x256xf32> to vector<8x4xf32>
    %2 = arith.truncf %1 : vector<8x4xf32> to vector<8x4xbf16>
    %c0_2 = arith.constant 0 : index
    %c0_3 = arith.constant 0 : index
    %3 = vector.load %arg2[%c0_2, %c0_3] : memref<4x128xbf16, #tpu.memory_space<vmem>>, vector<4x128xbf16>
    %cst_4 = arith.constant dense<0.000000e+00> : vector<8x128xf32>
    %4 = tpu.matmul %2, %3, %cst_4 {dimension_numbers = #tpu.dot_dimension_numbers<[1], [0], [0], [1], [0, 0, 1, 1], [], []>} : vector<8x4xbf16>, vector<4x128xbf16>, vector<8x128xf32> -> vector<8x128xf32>
    %c0_5 = arith.constant 0 : index
    %c0_6 = arith.constant 0 : index
    %5 = vector.load %arg3[%c0_5, %c0_6] : memref<1x128xf32, #tpu.memory_space<vmem>>, vector<1x128xf32>
    %6 = vector.broadcast %5 : vector<1x128xf32> to vector<8x128xf32>
    %7 = arith.addf %4, %6 : vector<8x128xf32>
    %cst_7 = arith.constant 0.000000e+00 : f32
    %8 = vector.broadcast %cst_7 : f32 to vector<8x128xf32>
    %9 = arith.maximumf %7, %8 : vector<8x128xf32>
    %10 = arith.mulf %9, %9 : vector<8x128xf32>
    %cst_8 = arith.constant dense<0.000000e+00> : vector<8xf32>
    %11 = vector.multi_reduction <add>, %10, %cst_8 [1] : vector<8x128xf32> to vector<8xf32>
    %12 = vector.shape_cast %11 : vector<8xf32> to vector<8x1xf32>
    %cst_9 = arith.constant 1.000000e-24 : f32
    %13 = vector.broadcast %cst_9 : f32 to vector<8x1xf32>
    %14 = arith.maximumf %12, %13 : vector<8x1xf32>
    %15 = math.rsqrt %14 : vector<8x1xf32>
    %16 = vector.broadcast %15 : vector<8x1xf32> to vector<8x128xf32>
    %17 = arith.mulf %9, %16 : vector<8x128xf32>
    %18 = arith.truncf %17 : vector<8x128xf32> to vector<8x128xbf16>
    %c0_10 = arith.constant 0 : index
    %c0_11 = arith.constant 0 : index
    %19 = vector.load %arg4[%c0_10, %c0_11] : memref<128x128xbf16, #tpu.memory_space<vmem>>, vector<128x128xbf16>
    %cst_12 = arith.constant dense<0.000000e+00> : vector<8x128xf32>
    %20 = tpu.matmul %18, %19, %cst_12 {dimension_numbers = #tpu.dot_dimension_numbers<[1], [0], [0], [1], [0, 0, 1, 1], [], []>} : vector<8x128xbf16>, vector<128x128xbf16>, vector<8x128xf32> -> vector<8x128xf32>
    %c0_13 = arith.constant 0 : index
    %c0_14 = arith.constant 0 : index
    %21 = vector.load %arg5[%c0_13, %c0_14] : memref<1x128xf32, #tpu.memory_space<vmem>>, vector<1x128xf32>
    %22 = vector.broadcast %21 : vector<1x128xf32> to vector<8x128xf32>
    %23 = arith.addf %20, %22 : vector<8x128xf32>
    %c0_15 = arith.constant 0 : index
    %c0_16 = arith.constant 0 : index
    %24 = vector.load %arg6[%c0_15, %c0_16] : memref<8x128xf32, #tpu.memory_space<vmem>>, vector<8x128xf32>
    tpu.vector_store %arg6[%c0_15, %c0_16], %23 {strides = array<i32>} : memref<8x128xf32, #tpu.memory_space<vmem>>, vector<8x128xf32>,
    return
  }
  func.func @transform_0(%arg0: i32) -> (i32, i32, i32) {
    %c0_i32 = arith.constant 0 : i32
    %c0_i32_0 = arith.constant 0 : i32
    %c0_i32_1 = arith.constant 0 : i32
    return %arg0, %c0_i32, %c0_i32_0 : i32, i32, i32
  }
  func.func @transform_1(%arg0: i32) -> (i32, i32) {
    %c0_i32 = arith.constant 0 : i32
    %c0_i32_0 = arith.constant 0 : i32
    %c0_i32_1 = arith.constant 0 : i32
    return %c0_i32, %c0_i32_0 : i32, i32
  }
  func.func @transform_2(%arg0: i32) -> (i32, i32) {
    %c0_i32 = arith.constant 0 : i32
    %c0_i32_0 = arith.constant 0 : i32
    %c0_i32_1 = arith.constant 0 : i32
    return %c0_i32, %c0_i32_0 : i32, i32
  }
  func.func @transform_3(%arg0: i32) -> (i32, i32) {
    %c0_i32 = arith.constant 0 : i32
    %c0_i32_0 = arith.constant 0 : i32
    %c0_i32_1 = arith.constant 0 : i32
    return %c0_i32, %c0_i32_0 : i32, i32
  }
  func.func @transform_4(%arg0: i32) -> (i32, i32) {
    %c0_i32 = arith.constant 0 : i32
    %c0_i32_0 = arith.constant 0 : i32
    %c0_i32_1 = arith.constant 0 : i32
    return %c0_i32, %c0_i32_0 : i32, i32
  }
  func.func @transform_5(%arg0: i32) -> (i32, i32) {
    %c0_i32 = arith.constant 0 : i32
    %c0_i32_0 = arith.constant 0 : i32
    return %arg0, %c0_i32 : i32, i32
  }
}

</mosaic_0001>

<llo_original>
// kernel: tpu_custom_call.1
$region0: #{tpu_custom_call.1}
  #allocation0 [shape = 'u32[]', space=smem, size = 0x4, offset = 0x4, fixed_abs, tag = 'smem constant byte address 0x4 - core index']
  #allocation1 [shape = 'u32[144,128]{1,0:T(1,128)}', space=vmem, size = 0x12000, scoped, tag = 'internal scratch']
  %s0 = inlined_call_operand.hbm [shape: f32[8,4,256], index: 0, kind: input, shape index: {}]
  %s1 = inlined_call_operand.hbm [shape: bf16[4,128], index: 1, kind: input, shape index: {}]
  %s2 = inlined_call_operand.vmem [shape: f32[1,128], index: 2, kind: input, shape index: {}]
  %s3 = inlined_call_operand.hbm [shape: bf16[128,128], index: 3, kind: input, shape index: {}]
  %s4 = inlined_call_operand.vmem [shape: f32[1,128], index: 4, kind: input, shape index: {}]
  %s5 = inlined_call_operand.hbm [shape: f32[8,128], index: 5, kind: output, shape index: {}]
  %s6 = sld [smem:[#allocation0]]
  $region42: #{tpu_custom_call.1} parent=0
    _
  %s8 = ssub.s32 1, %s6
  %s9 = scalar_select 0, %s8, %s6
  $region1: #{tpu_custom_call.1} parent=0
    #allocation2 [shape = 'u8[32768]{0}', space=vmem, size = 0x8000, scoped, tag = 'input window, operand 0, single buffered']
    #allocation3 [shape = 's32[1]{0}', space=sflag, size = 0x4, scoped, tag = 'scoped memory for tpu_custom_call.1']
    #allocation4 [shape = 's32[1]{0}', space=sflag, size = 0x4, scoped, tag = 'scoped memory for tpu_custom_call.1']
    #allocation5 [shape = 'u8[1024]{0}', space=vmem, size = 0x400, scoped, tag = 'input window, operand 1, single buffered']
    #allocation6 [shape = 's32[1]{0}', space=sflag, size = 0x4, scoped, tag = 'scoped memory for tpu_custom_call.1']
    #allocation7 [shape = 'u8[32768]{0}', space=vmem, size = 0x8000, scoped, tag = 'input window, operand 3, single buffered']
    #allocation8 [shape = 'u8[4096]{0}', space=vmem, size = 0x1000, scoped, tag = 'output window, operand 0, single buffered']
    %10 = vsyncpa [#allocation3], 0
    %11 = vsyncpa [#allocation6], 0
    %12 = vsyncpa [#allocation4], 0
    // Predicated region
    $region2: #{tpu_custom_call.1} parent=1 // pred_check
      _
    $region3: #{tpu_custom_call.1} parent=1 // pred_check_branch
      %14 = sbr.rel (0) target = $region5
    $region4: #{tpu_custom_call.1} parent=1 // pred_region
      %s16 = ssub.s32 1024, 1024
      %17 = vsyncadd [#allocation3], %s16
      %s18 = sshll.u32 [#allocation2], 4
      %s19 = int_to_ptr.vmem [resolvable:$true] %s18
      %24 = dma.hbm_to_vmem [thread:$0]  %s0, 1024, %s19, [#allocation3], 128, 128, 8
    $region5: #{tpu_custom_call.1} parent=1 // pred_fallthru
      _
    // Predicated region
    $region6: #{tpu_custom_call.1} parent=1 // pred_check
      _
    $region7: #{tpu_custom_call.1} parent=1 // pred_check_branch
      %26 = sbr.rel (0) target = $region9
    $region8: #{tpu_custom_call.1} parent=1 // pred_region
      %s28 = ssub.s32 32, 32
      %29 = vsyncadd [#allocation6], %s28
      %s31 = sshll.u32 [#allocation5], 4
      %s32 = int_to_ptr.vmem [resolvable:$true] %s31
      %34 = dma.hbm_to_vmem [thread:$0]  %s1, 32, %s32, [#allocation6]
    $region9: #{tpu_custom_call.1} parent=1 // pred_fallthru
      _
    // Predicated region
    $region10: #{tpu_custom_call.1} parent=1 // pred_check
      _
    $region11: #{tpu_custom_call.1} parent=1 // pred_check_branch
      %36 = sbr.rel (0) target = $region13
    $region12: #{tpu_custom_call.1} parent=1 // pred_region
      _
    $region13: #{tpu_custom_call.1} parent=1 // pred_fallthru
      _
    // Predicated region
    $region14: #{tpu_custom_call.1} parent=1 // pred_check
      _
    $region15: #{tpu_custom_call.1} parent=1 // pred_check_branch
      %38 = sbr.rel (0) target = $region17
    $region16: #{tpu_custom_call.1} parent=1 // pred_region
      %s40 = ssub.s32 1024, 1024
      %41 = vsyncadd [#allocation6], %s40
      %s42 = sshll.u32 [#allocation7], 4
      %s43 = int_to_ptr.vmem [resolvable:$true] %s42
      %48 = dma.hbm_to_vmem [thread:$0]  %s3, 1024, %s43, [#allocation6], 64, 64, 4
    $region17: #{tpu_custom_call.1} parent=1 // pred_fallthru
      _
    // Predicated region
    $region18: #{tpu_custom_call.1} parent=1 // pred_check
      _
    $region19: #{tpu_custom_call.1} parent=1 // pred_check_branch
      %50 = sbr.rel (0) target = $region21
    $region20: #{tpu_custom_call.1} parent=1 // pred_region
      _
    $region21: #{tpu_custom_call.1} parent=1 // pred_fallthru
      _
    // Predicated region
    $region22: #{tpu_custom_call.1} parent=1 // pred_check
      _
    $region23: #{tpu_custom_call.1} parent=1 // pred_check_branch
      %52 = sbr.rel (0) target = $region25
    $region24: #{tpu_custom_call.1} parent=1 // pred_region
      %53 = dma.done [#allocation3], 1024
    $region25: #{tpu_custom_call.1} parent=1 // pred_fallthru
      _
    // Predicated region
    $region26: #{tpu_custom_call.1} parent=1 // pred_check
      _
    $region27: #{tpu_custom_call.1} parent=1 // pred_check_branch
      %55 = sbr.rel (0) target = $region29
    $region28: #{tpu_custom_call.1} parent=1 // pred_region
      %56 = dma.done [#allocation6], 32
    $region29: #{tpu_custom_call.1} parent=1 // pred_fallthru
      _
    // Predicated region
    $region30: #{tpu_custom_call.1} parent=1 // pred_check
      _
    $region31: #{tpu_custom_call.1} parent=1 // pred_check_branch
      %58 = sbr.rel (0) target = $region33
    $region32: #{tpu_custom_call.1} parent=1 // pred_region
      %59 = dma.done [#allocation6], 1024
    $region33: #{tpu_custom_call.1} parent=1 // pred_fallthru
      _
    %v61 = vld [vmem:[#allocation2] sm:$0xff]
    %v62 = vld [vmem:[#allocation2 + $0x8] sm:$0xff]
    %v63 = vld [vmem:[#allocation2 + $0x10] sm:$0xff]
    %v64 = vld [vmem:[#allocation2 + $0x18] sm:$0xff]
    %v65 = vld [vmem:[#allocation2 + $0x20] sm:$0xff]
    %v66 = vld [vmem:[#allocation2 + $0x28] sm:$0xff]
    %v67 = vld [vmem:[#allocation2 + $0x30] sm:$0xff]
    %v68 = vld [vmem:[#allocation2 + $0x38] sm:$0xff]
    %v77 = vcombine.high %v61, %v61
    %v78 = vcombine.high %v62, %v62
    %v79 = vcombine.high %v63, %v63
    %v80 = vcombine.high %v64, %v64
    %v81 = vcombine.high %v65, %v65
    %v82 = vcombine.high %v66, %v66
    %v83 = vcombine.high %v67, %v67
    %v84 = vcombine.high %v68, %v68
    %vm93 = vcmask 1043456
    %v94 = vsel %vm93, %v61, 0.0
    %v95 = vsel %vm93, %v77, 0.0
    %v96 = vadd.f32 %v94, %v95
    %97 = vadd.xlane.f32.xlu0 %v96
    %v98 = vpop.xlane.xlu0 %97
    %v99 = vsel %vm93, %v62, 0.0
    %v100 = vsel %vm93, %v78, 0.0
    %v101 = vadd.f32 %v99, %v100
    %102 = vadd.xlane.f32.xlu0 %v101
    %v103 = vpop.xlane.xlu0 %102
    %v104 = vsel %vm93, %v63, 0.0
    %v105 = vsel %vm93, %v79, 0.0
    %v106 = vadd.f32 %v104, %v105
    %107 = vadd.xlane.f32.xlu0 %v106
    %v108 = vpop.xlane.xlu0 %107
    %v109 = vsel %vm93, %v64, 0.0
    %v110 = vsel %vm93, %v80, 0.0
    %v111 = vadd.f32 %v109, %v110
    %112 = vadd.xlane.f32.xlu0 %v111
    %v113 = vpop.xlane.xlu0 %112
    %v114 = vsel %vm93, %v65, 0.0
    %v115 = vsel %vm93, %v81, 0.0
    %v116 = vadd.f32 %v114, %v115
    %117 = vadd.xlane.f32.xlu0 %v116
    %v118 = vpop.xlane.xlu0 %117
    %v119 = vsel %vm93, %v66, 0.0
    %v120 = vsel %vm93, %v82, 0.0
    %v121 = vadd.f32 %v119, %v120
    %122 = vadd.xlane.f32.xlu0 %v121
    %v123 = vpop.xlane.xlu0 %122
    %v124 = vsel %vm93, %v67, 0.0
    %v125 = vsel %vm93, %v83, 0.0
    %v126 = vadd.f32 %v124, %v125
    %127 = vadd.xlane.f32.xlu0 %v126
    %v128 = vpop.xlane.xlu0 %127
    %v129 = vsel %vm93, %v68, 0.0
    %v130 = vsel %vm93, %v84, 0.0
    %v131 = vadd.f32 %v129, %v130
    %132 = vadd.xlane.f32.xlu0 %v131
    %v133 = vpop.xlane.xlu0 %132
    %v134 = vpack.c.bf16 %v98, %v98
    %v135 = vpack.c.bf16 %v103, %v103
    %v136 = vpack.c.bf16 %v108, %v108
    %v137 = vpack.c.bf16 %v113, %v113
    %v138 = vpack.c.bf16 %v118, %v118
    %v139 = vpack.c.bf16 %v123, %v123
    %v140 = vpack.c.bf16 %v128, %v128
    %v141 = vpack.c.bf16 %v133, %v133
    %v142 = vld [vmem:[#allocation5] sm:$0x3]
    %v143 = vld [vmem:[%s2] sm:$0x1]
    %v145 = vlaneseq
    %v146 = vshrl.u32 %v145, 7
    %v147 = vsub.s32 0, %v146
    %v148 = vrot.slane %v143, %v147
    %v158 = vunpack.c.l.b16 %v134
    %v159 = vunpack.c.l.b16 %v135
    %v160 = vunpack.c.l.b16 %v136
    %v161 = vunpack.c.l.b16 %v137
    %v162 = vunpack.c.l.b16 %v138
    %v163 = vunpack.c.l.b16 %v139
    %v164 = vunpack.c.l.b16 %v140
    %v165 = vunpack.c.l.b16 %v141
    %v166 = vlaneseq
    %v167 = vand.u32 %v166, 127
    %v168 = vlaneseq
    %v169 = vshrl.u32 %v168, 7
    %v170 = vsub.s32 %v167, %v169
    %v171 = vrot.slane %v158, %v170
    %v172 = vlaneseq
    %v173 = vshrl.u32 %v172, 7
    %v174 = vsub.s32 %v167, %v173
    %v175 = vrot.slane %v159, %v174
    %v176 = vlaneseq
    %v177 = vshrl.u32 %v176, 7
    %v178 = vsub.s32 %v167, %v177
    %v179 = vrot.slane %v160, %v178
    %v180 = vlaneseq
    %v181 = vshrl.u32 %v180, 7
    %v182 = vsub.s32 %v167, %v181
    %v183 = vrot.slane %v161, %v182
    %v184 = vlaneseq
    %v185 = vshrl.u32 %v184, 7
    %v186 = vsub.s32 %v167, %v185
    %v187 = vrot.slane %v162, %v186
    %v188 = vlaneseq
    %v189 = vshrl.u32 %v188, 7
    %v190 = vsub.s32 %v167, %v189
    %v191 = vrot.slane %v163, %v190
    %v192 = vlaneseq
    %v193 = vshrl.u32 %v192, 7
    %v194 = vsub.s32 %v167, %v193
    %v195 = vrot.slane %v164, %v194
    %v196 = vlaneseq
    %v197 = vshrl.u32 %v196, 7
    %v198 = vsub.s32 %v167, %v197
    %v199 = vrot.slane %v165, %v198
    %vm200 = vcmask 1041409
    %v201 = vsel %vm200, %v175, %v171
    %vm202 = vcmask 1042434
    %v203 = vsel %vm202, %v179, %v201
    %vm204 = vcmask 1043459
    %v205 = vsel %vm204, %v183, %v203
    %vm206 = vcmask 1044484
    %v207 = vsel %vm206, %v187, %v205
    %vm208 = vcmask 1045509
    %v209 = vsel %vm208, %v191, %v207
    %vm210 = vcmask 1046534
    %v211 = vsel %vm210, %v195, %v209
    %vm212 = vcmask 1047559
    %v213 = vsel %vm212, %v199, %v211
    %v214 = vpack.c.b16 %v213, %v213
    %vm215 = vcmask 31744
    %v217 = vsel %vm215, %v214, 0
    %vm219 = vcmask 1041408
    %v221 = vsel %vm219, %v142, 0
    %223 = vmatprep.subr.bf16.mxu0 0
    %224 = vmatpush1.bf16.msra.mxu0 0
    %225 = vmatprep.subr.bf16.mxu0 0
    %226 = vmatpush1.bf16.msra.mxu0 0
    %227 = vmatprep.subr.bf16.mxu0 0
    %228 = vmatpush1.bf16.msra.mxu0 0
    %229 = vmatprep.subr.bf16.mxu0 0
    %230 = vmatpush1.bf16.msra.mxu0 0
    %231 = vmatprep.subr.bf16.mxu0 0
    %232 = vmatpush1.bf16.msra.mxu0 0
    %233 = vmatprep.subr.bf16.mxu0 0
    %234 = vmatpush1.bf16.msra.mxu0 0
    %235 = vmatprep.subr.bf16.mxu0 0
    %236 = vmatpush1.bf16.msra.mxu0 0
    %237 = vmatprep.subr.bf16.mxu0 0
    %238 = vmatpush1.bf16.msra.mxu0 %v221
    %239 = vmatprep.subr.bf16.mxu0 0
    %240 = vmatpush2.bf16.msra.mxu0 0
    %241 = vmatprep.subr.bf16.mxu0 0
    %242 = vmatpush2.bf16.msra.mxu0 0
    %243 = vmatprep.subr.bf16.mxu0 0
    %244 = vmatpush2.bf16.msra.mxu0 0
    %245 = vmatprep.subr.bf16.mxu0 0
    %246 = vmatpush2.bf16.msra.mxu0 0
    %247 = vmatprep.subr.bf16.mxu0 0
    %248 = vmatpush2.bf16.msra.mxu0 0
    %249 = vmatprep.subr.bf16.mxu0 0
    %250 = vmatpush2.bf16.msra.mxu0 0
    %251 = vmatprep.subr.bf16.mxu0 0
    %252 = vmatpush2.bf16.msra.mxu0 0
    %253 = vmatprep.subr.bf16.mxu0 0
    %254 = vmatpush2.bf16.msra.mxu0 0
    %255 = vmatprep.mubr.bf16.mxu0 0
    %256 = vmatmul.mubr.bf16.gmra.mxu0 %v217
    %v257 = vpop.f32.mrf.mxu0
    %v258 = vadd.f32 %v148, %v257
    %v259 = vpop.f32.mrf.mxu0
    %v260 = vpop.f32.mrf.mxu0
    %v261 = vpop.f32.mrf.mxu0
    %262 = vdwg.mxu0
    %v263 = vmax.f32 %v258, 0.0
    %v264 = vmul.f32 %v263, %v263
    %265 = vadd.xlane.f32.xlu0 %v264
    %v266 = vpop.xlane.xlu0 %265
    %v267 = vmax.f32 %v266, 1e-24
    %v268 = vrsqrt.pop %v267
    %v269 = vmul.f32 %v263, %v268
    %v270 = vpack.c.bf16 %v269, %v269
    %v271 = vld [vmem:[#allocation7] sm:$0xf]
    %v272 = vld [vmem:[#allocation7 + $0x4] sm:$0xf]
    %v273 = vld [vmem:[#allocation7 + $0x8] sm:$0xf]
    %v274 = vld [vmem:[#allocation7 + $0xc] sm:$0xf]
    %v275 = vld [vmem:[#allocation7 + $0x10] sm:$0xf]
    %v276 = vld [vmem:[#allocation7 + $0x14] sm:$0xf]
    %v277 = vld [vmem:[#allocation7 + $0x18] sm:$0xf]
    %v278 = vld [vmem:[#allocation7 + $0x1c] sm:$0xf]
    %v279 = vld [vmem:[#allocation7 + $0x20] sm:$0xf]
    %v280 = vld [vmem:[#allocation7 + $0x24] sm:$0xf]
    %v281 = vld [vmem:[#allocation7 + $0x28] sm:$0xf]
    %v282 = vld [vmem:[#allocation7 + $0x2c] sm:$0xf]
    %v283 = vld [vmem:[#allocation7 + $0x30] sm:$0xf]
    %v284 = vld [vmem:[#allocation7 + $0x34] sm:$0xf]
    %v285 = vld [vmem:[#allocation7 + $0x38] sm:$0xf]
    %v286 = vld [vmem:[#allocation7 + $0x3c] sm:$0xf]
    %v287 = vld [vmem:[%s4] sm:$0x1]
    %v289 = vlaneseq
    %v290 = vshrl.u32 %v289, 7
    %v291 = vsub.s32 0, %v290
    %v292 = vrot.slane %v287, %v291
    %v310 = vunpack.c.l.b16 %v271
    %v311 = vunpack.c.l.b16 %v272
    %v312 = vunpack.c.l.b16 %v273
    %v313 = vunpack.c.l.b16 %v274
    %v314 = vunpack.c.l.b16 %v275
    %v315 = vunpack.c.l.b16 %v276
    %v316 = vunpack.c.l.b16 %v277
    %v317 = vunpack.c.l.b16 %v278
    %v318 = vunpack.c.l.b16 %v279
    %v319 = vunpack.c.l.b16 %v280
    %v320 = vunpack.c.l.b16 %v281
    %v321 = vunpack.c.l.b16 %v282
    %v322 = vunpack.c.l.b16 %v283
    %v323 = vunpack.c.l.b16 %v284
    %v324 = vunpack.c.l.b16 %v285
    %v325 = vunpack.c.l.b16 %v286
    %v326 = vpack.c.b16 %v311, %v310
    %v327 = vpack.c.b16 %v313, %v312
    %v328 = vpack.c.b16 %v315, %v314
    %v329 = vpack.c.b16 %v317, %v316
    %v330 = vpack.c.b16 %v319, %v318
    %v331 = vpack.c.b16 %v321, %v320
    %v332 = vpack.c.b16 %v323, %v322
    %v333 = vpack.c.b16 %v325, %v324
    %342 = vmatprep.subr.bf16.mxu0 0
    %343 = vmatpush1.bf16.msra.mxu0 %v333
    %344 = vmatprep.subr.bf16.mxu0 0
    %345 = vmatpush1.bf16.msra.mxu0 %v332
    %346 = vmatprep.subr.bf16.mxu0 0
    %347 = vmatpush1.bf16.msra.mxu0 %v331
    %348 = vmatprep.subr.bf16.mxu0 0
    %349 = vmatpush1.bf16.msra.mxu0 %v330
    %350 = vmatprep.subr.bf16.mxu0 0
    %351 = vmatpush1.bf16.msra.mxu0 %v329
    %352 = vmatprep.subr.bf16.mxu0 0
    %353 = vmatpush1.bf16.msra.mxu0 %v328
    %354 = vmatprep.subr.bf16.mxu0 0
    %355 = vmatpush1.bf16.msra.mxu0 %v327
    %356 = vmatprep.subr.bf16.mxu0 0
    %357 = vmatpush1.bf16.msra.mxu0 %v326
    %358 = vmatprep.subr.bf16.mxu0 0
    %359 = vmatpush2.bf16.msra.mxu0 0
    %360 = vmatprep.subr.bf16.mxu0 0
    %361 = vmatpush2.bf16.msra.mxu0 0
    %362 = vmatprep.subr.bf16.mxu0 0
    %363 = vmatpush2.bf16.msra.mxu0 0
    %364 = vmatprep.subr.bf16.mxu0 0
    %365 = vmatpush2.bf16.msra.mxu0 0
    %366 = vmatprep.subr.bf16.mxu0 0
    %367 = vmatpush2.bf16.msra.mxu0 0
    %368 = vmatprep.subr.bf16.mxu0 0
    %369 = vmatpush2.bf16.msra.mxu0 0
    %370 = vmatprep.subr.bf16.mxu0 0
    %371 = vmatpush2.bf16.msra.mxu0 0
    %372 = vmatprep.subr.bf16.mxu0 0
    %373 = vmatpush2.bf16.msra.mxu0 0
    %374 = vmatprep.mubr.bf16.mxu0 0
    %375 = vmatmul.mubr.bf16.gmra.mxu0 %v270
    %v376 = vpop.f32.mrf.mxu0
    %v377 = vadd.f32 %v292, %v376
    %v378 = vpop.f32.mrf.mxu0
    %v379 = vpop.f32.mrf.mxu0
    %v380 = vpop.f32.mrf.mxu0
    %381 = vdwg.mxu0
    %382 = vst [vmem:[#allocation8] sm:$0xff] %v377
    // Predicated region
    $region34: #{tpu_custom_call.1} parent=1 // pred_check
      _
    $region35: #{tpu_custom_call.1} parent=1 // pred_check_branch
      %384 = sbr.rel (0) target = $region37
    $region36: #{tpu_custom_call.1} parent=1 // pred_region
      %s386 = ssub.s32 128, 128
      %387 = vsyncadd [#allocation4], %s386
      %s389 = sshll.u32 [#allocation8], 4
      %s390 = int_to_ptr.vmem [resolvable:$true] %s389
      %392 = dma.vmem_to_hbm [thread:$0]  %s390, 128, %s5, [#allocation4]
    $region37: #{tpu_custom_call.1} parent=1 // pred_fallthru
      _
    // Predicated region
    $region38: #{tpu_custom_call.1} parent=1 // pred_check
      _
    $region39: #{tpu_custom_call.1} parent=1 // pred_check_branch
      %394 = sbr.rel (0) target = $region41
    $region40: #{tpu_custom_call.1} parent=1 // pred_region
      %395 = dma.done [#allocation4], 128
    $region41: #{tpu_custom_call.1} parent=1 // pred_fallthru
      _
    %396 = vsyncpa [#allocation3], 1
    %397 = vsyncpa [#allocation6], 1
    %398 = vsyncpa [#allocation4], 1

</llo_original>
